<compile_context>
chip_gen: v6e
topology: v6e:2x2x1
jax: 0.10.0
libtpu: 0.0.40
codegen_flags: <defaults>
</compile_context>

<pallas_src>
import functools

import jax
import jax.numpy as jnp
from jax.experimental import pallas as pl
from jax.experimental.pallas import tpu as pltpu


_L_CAP = 2048                       # lane-axis tile cap (multiple of 128)
_C_CAP = 512                        # channel-axis tile cap (multiple of 8 and 128)
_TARGET_BLOCK_BYTES = 4 << 20       # aim for ~4 MiB of x per grid step


# ---------------------------------------------------------------------------
# Helpers
# ---------------------------------------------------------------------------

def _round_up(a, b):
    return -(-a // b) * b


def _fold_lane_groups(x, acc_w):
    """Reduce the last axis from l_tile down to acc_w with pure VPU maxima.

    When a fold actually happens acc_w == 128, so every slice is 128-aligned
    on the lane axis: plain vreg selection + elementwise max, no XLU work.
    """
    l_tile = x.shape[-1]
    if l_tile == acc_w:
        return x
    folded = x[..., 0:acc_w]
    for g in range(1, l_tile // acc_w):
        folded = jnp.maximum(folded, x[..., g * acc_w:(g + 1) * acc_w])
    return folded


# ---------------------------------------------------------------------------
# Kernels
# ---------------------------------------------------------------------------

def _plain_max_kernel(x_ref, o_ref, acc_ref, *, L, l_tile, acc_w, needs_l_mask):
    # x_ref:   (B_TILE, C_TILE, L_TILE)  float
    # o_ref:   (B_TILE, 1, C_TILE)       float
    # acc_ref: (B_TILE, C_TILE, ACC_W)   running max (VMEM scratch)
    l = pl.program_id(2)
    last = pl.num_programs(2) - 1
    neg_inf = jnp.array(-jnp.inf, dtype=acc_ref.dtype)

    @pl.when(l == 0)
    def _init():
        acc_ref[...] = jnp.full(acc_ref.shape, -jnp.inf, dtype=acc_ref.dtype)

    x = x_ref[...].astype(acc_ref.dtype)

    def _accumulate(xv):
        acc_ref[...] = jnp.maximum(acc_ref[...], _fold_lane_groups(xv, acc_w))

    if needs_l_mask:
        # Only the final L chunk is ragged; keep the fast path for full tiles.
        @pl.when(l == last)
        def _ragged():
            lids = jax.lax.broadcasted_iota(
                jnp.int32, (1, 1, x.shape[-1]), 2) + l * l_tile
            _accumulate(jnp.where(lids < L, x, neg_inf))

        @pl.when(l != last)
        def _full():
            _accumulate(x)
    else:
        _accumulate(x)

    @pl.when(l == last)
    def _finalize():
        red = jnp.max(acc_ref[...], axis=-1)            # one XLU reduce per tile
        o_ref[...] = red[:, None, :].astype(o_ref.dtype)


def _masked_max_kernel(x_ref, m_ref, o_ref, acc_ref, *, L, l_tile, acc_w,
                       needs_l_mask):
    # x_ref:   (B_TILE, C_TILE, L_TILE)  float
    # m_ref:   (B_TILE, 1, L_TILE)       int8 (0 = masked out)
    # o_ref:   (B_TILE, 1, C_TILE)       float
    # acc_ref: (B_TILE, C_TILE, ACC_W)   running max (VMEM scratch)
    l = pl.program_id(2)
    last = pl.num_programs(2) - 1
    neg_inf = jnp.array(-jnp.inf, dtype=acc_ref.dtype)

    @pl.when(l == 0)
    def _init():
        acc_ref[...] = jnp.full(acc_ref.shape, -jnp.inf, dtype=acc_ref.dtype)

    x = x_ref[...].astype(acc_ref.dtype)
    keep = m_ref[...] != 0                              # (B_TILE, 1, L_TILE)

    def _accumulate(k):
        xm = jnp.where(k, x, neg_inf)                   # broadcast over C (VPU)
        acc_ref[...] = jnp.maximum(acc_ref[...], _fold_lane_groups(xm, acc_w))

    if needs_l_mask:
        @pl.when(l == last)
        def _ragged():
            lids = jax.lax.broadcasted_iota(
                jnp.int32, (1, 1, x.shape[-1]), 2) + l * l_tile
            _accumulate(jnp.logical_and(keep, lids < L))

        @pl.when(l != last)
        def _full():
            _accumulate(keep)
    else:
        _accumulate(keep)

    @pl.when(l == last)
    def _finalize():
        red = jnp.max(acc_ref[...], axis=-1)
        o_ref[...] = red[:, None, :].astype(o_ref.dtype)


# ---------------------------------------------------------------------------
# Wrapper
# ---------------------------------------------------------------------------

def _pick_tiles(N, C, L, itemsize):
    # Lane tile (L): full dim if small, else a big multiple of 128.
    l_tile = L if L <= _L_CAP else _L_CAP
    # Channel tile (C): full dim if small, else 512 (mult. of 8 sublanes and of
    # 128 lanes for lane-dense, unmasked output stores).
    c_tile = C if C <= _C_CAP else _C_CAP
    # Batch tile: pack batch rows when a single (1, c_tile, l_tile) slab is
    # small (e.g. C=4), so each grid step still moves a multi-MiB DMA.
    block_bytes = c_tile * l_tile * itemsize
    b_tile = 1
    if block_bytes < _TARGET_BLOCK_BYTES:
        b_tile = max(1, min(N, _TARGET_BLOCK_BYTES // max(block_bytes, 1)))
    # Keep >= 2 "parallel" tiles when it costs nothing (v7x has 2 TensorCores).
    if (-(-C // c_tile)) == 1 and b_tile >= N and N >= 2:
        b_tile = (N + 1) // 2
    # Accumulator lane width: 128 whenever we can fold lane groups, else the
    # (small / single-step) full tile width.
    acc_w = 128 if l_tile % 128 == 0 else l_tile
    return b_tile, c_tile, l_tile, acc_w


def _vmem_limit_bytes(b_tile, c_tile, l_tile, acc_w, itemsize, masked):
    # Double-buffered inputs/outputs + accumulator + headroom; padded to the
    # (8, 128) tiling (int8 mask pads to (32, 128)).  Clamp to stay under the
    # v7x 64 MiB physical VMEM while raising the 16/32 MiB default scoped limit.
    x_blk = b_tile * _round_up(c_tile, 8) * _round_up(l_tile, 128) * itemsize
    acc_blk = b_tile * _round_up(c_tile, 8) * _round_up(acc_w, 128) * 4
    out_blk = b_tile * 8 * _round_up(c_tile, 128) * itemsize
    m_blk = (b_tile * 32 * _round_up(l_tile, 128)) if masked else 0
    total = 2 * (x_blk + m_blk + out_blk) + acc_blk + (8 << 20)
    return int(min(max(total, 32 << 20), 56 << 20))


def global_max_1d(x, mask=None):
    """Pallas equivalent of GlobalMax1D.forward.

    x:    (N, C, L) float array.
    mask: optional (N, L) boolean array (True = keep position).
    returns (N, C) per-channel maxima over the length axis.
    Rows with an all-False mask yield -inf (same as the PyTorch module).
    """
    N, C, L = x.shape
    assert jnp.issubdtype(x.dtype, jnp.floating), "GlobalMax1D needs a float dtype"
    if mask is not None:
        assert mask.shape == (N, L), f"mask must be (N, L), got {mask.shape}"

    itemsize = jnp.dtype(x.dtype).itemsize
    b_tile, c_tile, l_tile, acc_w = _pick_tiles(N, C, L, itemsize)
    needs_l_mask = (L % l_tile) != 0
    grid = (pl.cdiv(N, b_tile), pl.cdiv(C, c_tile), pl.cdiv(L, l_tile))

    x_spec = pl.BlockSpec((b_tile, c_tile, l_tile), lambda n, c, l: (n, c, l))
    # Output kept 3D (N, 1, C) so the block's last two dims are (1, C_TILE):
    # lane-dense stores, sublane dim equals the full array dim.
    out_spec = pl.BlockSpec((b_tile, 1, c_tile), lambda n, c, l: (n, 0, c))
    out_shape = jax.ShapeDtypeStruct((N, 1, C), x.dtype)
    # Max is exact in any float dtype -> accumulate in the input dtype
    # (keeps bf16 narrow on v6e/v7x; f32 stays f32).
    scratch = [pltpu.VMEM((b_tile, c_tile, acc_w), x.dtype)]
    cparams = pltpu.CompilerParams(
        dimension_semantics=("parallel", "parallel", "arbitrary"),
        vmem_limit_bytes=_vmem_limit_bytes(
            b_tile, c_tile, l_tile, acc_w, itemsize, mask is not None))

    if mask is None:
        kernel = functools.partial(
            _plain_max_kernel, L=L, l_tile=l_tile, acc_w=acc_w,
            needs_l_mask=needs_l_mask)
        out = pl.pallas_call(
            kernel,
            out_shape=out_shape,
            grid_spec=pltpu.PrefetchScalarGridSpec(
                num_scalar_prefetch=0,
                grid=grid,
                in_specs=[x_spec],
                out_specs=out_spec,
                scratch_shapes=scratch),
            compiler_params=cparams,
        )(x)
    else:
        mask3 = mask.astype(jnp.int8).reshape(N, 1, L)
        m_spec = pl.BlockSpec((b_tile, 1, l_tile), lambda n, c, l: (n, 0, l))
        kernel = functools.partial(
            _masked_max_kernel, L=L, l_tile=l_tile, acc_w=acc_w,
            needs_l_mask=needs_l_mask)
        out = pl.pallas_call(
            kernel,
            out_shape=out_shape,
            grid_spec=pltpu.PrefetchScalarGridSpec(
                num_scalar_prefetch=0,
                grid=grid,
                in_specs=[x_spec, m_spec],
                out_specs=out_spec,
                scratch_shapes=scratch),
            compiler_params=cparams,
        )(x, mask3)

    return out.reshape(N, C)


# ---------------------------------------------------------------------------
# Reference + test
# ---------------------------------------------------------------------------

def _reference(x, mask=None):
    if mask is not None:
        x = jnp.where(mask[:, None, :], x, -jnp.inf)
    return jnp.max(x, axis=-1)


if __name__ == "__main__":
    key = jax.random.PRNGKey(0)
    kx, km, kx2, km2 = jax.random.split(key, 4)

    # Small shape consistent with the module: (batch=2, channels=4, length=16).
    N, C, L = 2, 4, 16
    x = jax.random.normal(kx, (N, C, L), dtype=jnp.float32)
    mask = jax.random.bernoulli(km, p=0.7, shape=(N, L))
    mask = mask.at[:, 0].set(True)  # at least one valid position per row

    out_masked = jax.block_until_ready(global_max_1d(x, mask))
    ref_masked = _reference(x, mask)
    assert out_masked.shape == (N, C)
    assert jnp.allclose(out_masked, ref_masked), "masked max mismatch"

    out_plain = jax.block_until_ready(global_max_1d(x, None))
    assert jnp.allclose(out_plain, _reference(x, None)), "plain max mismatch"

    # A shape that exercises the tiled path: C > C_TILE (ragged C tail), a
    # ragged L tail with multiple L chunks, and the lane-group fold.
    N2, C2, L2 = 2, 640, 2500
    x2 = jax.random.normal(kx2, (N2, C2, L2), dtype=jnp.float32)
    mask2 = jax.random.bernoulli(km2, p=0.5, shape=(N2, L2)).at[:, 0].set(True)
    out2 = jax.block_until_ready(global_max_1d(x2, mask2))
    assert out2.shape == (N2, C2)
    assert jnp.allclose(out2, _reference(x2, mask2)), "tiled masked max mismatch"

    print("KERNEL_OK")
</pallas_src>

<mosaic_0001>
module attributes {stable_mosaic.version = 11 : i64} {
  func.func @_masked_max_kernel(%arg0: i32, %arg1: i32, %arg2: i32, %arg3: memref<1x4x16xf32, #tpu.memory_space<vmem>>, %arg4: memref<1x1x16xi8, #tpu.memory_space<vmem>>, %arg5: memref<1x1x4xf32, #tpu.memory_space<vmem>>, %arg6: memref<1x4x16xf32, #tpu.memory_space<vmem>>) attributes {dimension_semantics = [#tpu.dimension_semantics<parallel>, #tpu.dimension_semantics<parallel>, #tpu.dimension_semantics<arbitrary>], iteration_bounds = array<i64: 2, 1, 1>, scalar_prefetch = 0 : i64, scratch_operands = 1 : i64, tpu.core_type = #tpu.core_type<tc>, window_params = [{transform_indices = @transform_0, window_bounds = array<i64: 1, 4, 16>}, {transform_indices = @transform_1, window_bounds = array<i64: 1, 1, 16>}, {transform_indices = @transform_2, window_bounds = array<i64: 1, 1, 4>}]} {
    %c0_i32 = arith.constant 0 : i32
    %0 = arith.cmpi eq, %arg2, %c0_i32 : i32
    %1 = arith.extui %0 : i1 to i32
    %c0_i32_0 = arith.constant 0 : i32
    %2 = arith.cmpi ne, %1, %c0_i32_0 : i32
    scf.if %2 {
      %cst_14 = arith.constant 0xFF800000 : f32
      %17 = vector.broadcast %cst_14 : f32 to vector<1x4x16xf32>
      %c0_15 = arith.constant 0 : index
      %c0_16 = arith.constant 0 : index
      %c0_17 = arith.constant 0 : index
      %18 = vector.load %arg6[%c0_15, %c0_16, %c0_17] : memref<1x4x16xf32, #tpu.memory_space<vmem>>, vector<1x4x16xf32>
      tpu.vector_store %arg6[%c0_15, %c0_16, %c0_17], %17 {strides = array<i32>} : memref<1x4x16xf32, #tpu.memory_space<vmem>>, vector<1x4x16xf32>,
    } else {
    }
    %c0 = arith.constant 0 : index
    %c0_1 = arith.constant 0 : index
    %c0_2 = arith.constant 0 : index
    %3 = vector.load %arg3[%c0, %c0_1, %c0_2] : memref<1x4x16xf32, #tpu.memory_space<vmem>>, vector<1x4x16xf32>
    %c0_3 = arith.constant 0 : index
    %c0_4 = arith.constant 0 : index
    %c0_5 = arith.constant 0 : index
    %4 = vector.load %arg4[%c0_3, %c0_4, %c0_5] : memref<1x1x16xi8, #tpu.memory_space<vmem>>, vector<1x1x16xi8>
    %c0_i8 = arith.constant 0 : i8
    %5 = vector.broadcast %c0_i8 : i8 to vector<1x1x16xi8>
    %6 = arith.cmpi ne, %4, %5 : vector<1x1x16xi8>
    %cst = arith.constant 0xFF800000 : f32
    %7 = vector.shape_cast %6 : vector<1x1x16xi1> to vector<1x1x16xi1>
    %8 = vector.broadcast %7 : vector<1x1x16xi1> to vector<1x4x16xi1>
    %9 = vector.broadcast %cst : f32 to vector<1x4x16xf32>
    %10 = arith.select %8, %3, %9 : vector<1x4x16xi1>, vector<1x4x16xf32>
    %c0_6 = arith.constant 0 : index
    %c0_7 = arith.constant 0 : index
    %c0_8 = arith.constant 0 : index
    %11 = vector.load %arg6[%c0_6, %c0_7, %c0_8] : memref<1x4x16xf32, #tpu.memory_space<vmem>>, vector<1x4x16xf32>
    %12 = arith.maximumf %11, %10 : vector<1x4x16xf32>
    %c0_9 = arith.constant 0 : index
    %c0_10 = arith.constant 0 : index
    %c0_11 = arith.constant 0 : index
    %13 = vector.load %arg6[%c0_9, %c0_10, %c0_11] : memref<1x4x16xf32, #tpu.memory_space<vmem>>, vector<1x4x16xf32>
    tpu.vector_store %arg6[%c0_9, %c0_10, %c0_11], %12 {strides = array<i32>} : memref<1x4x16xf32, #tpu.memory_space<vmem>>, vector<1x4x16xf32>,
    %c0_i32_12 = arith.constant 0 : i32
    %14 = arith.cmpi eq, %arg2, %c0_i32_12 : i32
    %15 = arith.extui %14 : i1 to i32
    %c0_i32_13 = arith.constant 0 : i32
    %16 = arith.cmpi ne, %15, %c0_i32_13 : i32
    scf.if %16 {
      %c0_14 = arith.constant 0 : index
      %c0_15 = arith.constant 0 : index
      %c0_16 = arith.constant 0 : index
      %17 = vector.load %arg6[%c0_14, %c0_15, %c0_16] : memref<1x4x16xf32, #tpu.memory_space<vmem>>, vector<1x4x16xf32>
      %cst_17 = arith.constant dense<0xFF800000> : vector<1x4xf32>
      %18 = vector.multi_reduction <maximumf>, %17, %cst_17 [2] : vector<1x4x16xf32> to vector<1x4xf32>
      %19 = vector.shape_cast %18 : vector<1x4xf32> to vector<1x1x4xf32>
      %c0_18 = arith.constant 0 : index
      %c0_19 = arith.constant 0 : index
      %c0_20 = arith.constant 0 : index
      %20 = vector.load %arg5[%c0_18, %c0_19, %c0_20] : memref<1x1x4xf32, #tpu.memory_space<vmem>>, vector<1x1x4xf32>
      tpu.vector_store %arg5[%c0_18, %c0_19, %c0_20], %19 {strides = array<i32>} : memref<1x1x4xf32, #tpu.memory_space<vmem>>, vector<1x1x4xf32>,
    } else {
    }
    return
  }
  func.func @transform_0(%arg0: i32, %arg1: i32, %arg2: i32) -> (i32, i32, i32) {
    %c0_i32 = arith.constant 0 : i32
    return %arg0, %arg1, %arg2 : i32, i32, i32
  }
  func.func @transform_1(%arg0: i32, %arg1: i32, %arg2: i32) -> (i32, i32, i32) {
    %c0_i32 = arith.constant 0 : i32
    %c0_i32_0 = arith.constant 0 : i32
    return %arg0, %c0_i32, %arg2 : i32, i32, i32
  }
  func.func @transform_2(%arg0: i32, %arg1: i32, %arg2: i32) -> (i32, i32, i32) {
    %c0_i32 = arith.constant 0 : i32
    %c0_i32_0 = arith.constant 0 : i32
    return %arg0, %c0_i32, %arg1 : i32, i32, i32
  }
}

</mosaic_0001>

<llo_original>
// kernel: tpu_custom_call.1
$region0: #{tpu_custom_call.1}
  #allocation0 [shape = 'u32[]', space=smem, size = 0x4, offset = 0x4, fixed_abs, tag = 'smem constant byte address 0x4 - core index']
  #allocation1 [shape = 'u32[144,128]{1,0:T(1,128)}', space=vmem, size = 0x12000, scoped, tag = 'internal scratch']
  #allocation2 [shape = 'f32[1,4,16]{2,1,0:T(4,128)}', space=vmem, size = 0x800, scoped, tag = 'scratch operand']
  %s0 = inlined_call_operand.hbm [shape: f32[2,4,16], index: 0, kind: input, shape index: {}]
  %s1 = inlined_call_operand.vmem [shape: s8[2,1,16], index: 1, kind: input, shape index: {}]
  %s2 = inlined_call_operand.hbm [shape: f32[2,1,4], index: 2, kind: output, shape index: {}]
  %s3 = sld [smem:[#allocation0]]
  $region53: #{tpu_custom_call.1} parent=0
    _
  %s5 = ssub.s32 1, %s3
  %s6 = scalar_select 0, %s5, %s3
  $region1: #{tpu_custom_call.1} parent=0
    #allocation3 [shape = 'u8[4096]{0}', space=vmem, size = 0x1000, scoped, tag = 'input window, operand 0']
    #allocation4 [shape = 's32[2]{0}', space=sflag, size = 0x8, scoped, tag = 'scoped memory for tpu_custom_call.1']
    #allocation5 [shape = 's32[2]{0}', space=sflag, size = 0x8, scoped, tag = 'scoped memory for tpu_custom_call.1']
    #allocation6 [shape = 'u8[1024]{0}', space=vmem, size = 0x400, scoped, tag = 'output window, operand 0']
    %7 = vsyncpa [#allocation4], 0
    %s8 = scalar_lea.sflag [#allocation4], 1
    %9 = vsyncpa %s8, 0
    %10 = vsyncpa [#allocation5], 0
    %s11 = scalar_lea.sflag [#allocation5], 1
    %12 = vsyncpa %s11, 0
    loop: start=0, step=1, limit=4
    $region2: #{tpu_custom_call.1} parent=1 // loop_pre_header
      _
    $region3: #{tpu_custom_call.1} parent=1 // loop_header
      %s14 = sphi 0, %s18
      %p15 = scmp.ge.s32.totalorder %s14, 4
      %s21 = sphi 0, %s40
      %s22 = sphi 0, %s36
      %s23 = sphi 0, %s32
      %s24 = sphi 0, %s21
      %s25 = sphi 0, %s22
      %s26 = sphi 0, %s23
      %s27 = sphi 0, %s24
      %s28 = sphi 0, %s25
      %s29 = sphi 0, %s26
      %s47 = sphi 0, %s49
      %s50 = sphi 0, %s47
      %s51 = sphi 0, %s50
      %s67 = sphi 0, %s51
      %s75 = sphi 0, %s77
      %s78 = sphi 0, %s75
      %s79 = sphi 0, %s78
      %s95 = sphi 0, %s79
      %s103 = sphi 0, %s105
      %s106 = sphi 0, %s103
      %s107 = sphi 0, %s106
      %s123 = sphi 0, %s107
    $region4: #{tpu_custom_call.1} parent=1 // loop_header_branch
      %17 = sbr.rel (%p15) target = $region8
    $region5: #{tpu_custom_call.1} parent=1 // loop_body
      %s19 = ssub.s32 %s14, 1
      %s20 = ssub.s32 %s14, 2
      %s30 = sadd.s32 1, %s23
      %p31 = scmp.ge.s32.totalorder %s30, 1
      %s32 = scalar_select %p31, 0, %s30
      %s33 = sadd.s32 1, %s22
      %s34 = scalar_select %p31, %s33, %s22
      %p35 = scmp.ge.s32.totalorder %s34, 1
      %s36 = scalar_select %p35, 0, %s34
      %s37 = sadd.s32 1, %s21
      %s38 = scalar_select %p35, %s37, %s21
      %p39 = scmp.ge.s32.totalorder %s38, 2
      %s40 = scalar_select %p39, 0, %s38
      %s41 = ssub.s32 %s21, %s40
      %s42 = ssub.s32 %s22, %s36
      %s43 = sor.u32 %s41, %s42
      %s44 = ssub.s32 %s23, %s32
      %s45 = sor.u32 %s43, %s44
      %p46 = scmp.eq.s32.totalorder %s45, 0
      %s48 = sadd.s32 %s47, 1
      %s49 = scalar_select %p46, %s47, %s48
      %p52 = pneg %p46
      %p53 = scmp.eq.s32.totalorder %s14, 1
      %p54 = por %p52, %p53
      %p55 = scmp.ne.s32.totalorder %s47, %s50
      %p56 = scmp.eq.s32.totalorder %s14, 0
      %p57 = por %p55, %p56
      %p58 = scmp.ne.s32.totalorder %s47, %s50
      %p59 = scmp.eq.s32.totalorder %s19, 1
      %p60 = por %p58, %p59
      %p61 = scmp.ne.s32.totalorder %s50, %s51
      %p62 = scmp.eq.s32.totalorder %s19, 0
      %p63 = por %p61, %p62
      %p64 = scmp.ne.s32.totalorder %s50, %s51
      %p65 = scmp.eq.s32.totalorder %s20, 1
      %p66 = por %p64, %p65
      %p68 = scmp.ne.s32.totalorder %s51, %s67
      %p69 = scmp.eq.s32.totalorder %s20, 0
      %p70 = por %p68, %p69
      %s71 = ssub.s32 %s21, %s40
      %s72 = ssub.s32 %s23, %s32
      %s73 = sor.u32 %s71, %s72
      %p74 = scmp.eq.s32.totalorder %s73, 0
      %s76 = sadd.s32 %s75, 1
      %s77 = scalar_select %p74, %s75, %s76
      %p80 = pneg %p74
      %p81 = scmp.eq.s32.totalorder %s14, 1
      %p82 = por %p80, %p81
      %p83 = scmp.ne.s32.totalorder %s75, %s78
      %p84 = scmp.eq.s32.totalorder %s14, 0
      %p85 = por %p83, %p84
      %p86 = scmp.ne.s32.totalorder %s75, %s78
      %p87 = scmp.eq.s32.totalorder %s19, 1
      %p88 = por %p86, %p87
      %p89 = scmp.ne.s32.totalorder %s78, %s79
      %p90 = scmp.eq.s32.totalorder %s19, 0
      %p91 = por %p89, %p90
      %p92 = scmp.ne.s32.totalorder %s78, %s79
      %p93 = scmp.eq.s32.totalorder %s20, 1
      %p94 = por %p92, %p93
      %p96 = scmp.ne.s32.totalorder %s79, %s95
      %p97 = scmp.eq.s32.totalorder %s20, 0
      %p98 = por %p96, %p97
      %s99 = ssub.s32 %s21, %s40
      %s100 = ssub.s32 %s22, %s36
      %s101 = sor.u32 %s99, %s100
      %p102 = scmp.eq.s32.totalorder %s101, 0
      %s104 = sadd.s32 %s103, 1
      %s105 = scalar_select %p102, %s103, %s104
      %p108 = pneg %p102
      %p109 = scmp.eq.s32.totalorder %s14, 1
      %p110 = por %p108, %p109
      %p111 = scmp.ne.s32.totalorder %s103, %s106
      %p112 = scmp.eq.s32.totalorder %s14, 0
      %p113 = por %p111, %p112
      %p114 = scmp.ne.s32.totalorder %s103, %s106
      %p115 = scmp.eq.s32.totalorder %s19, 1
      %p116 = por %p114, %p115
      %p117 = scmp.ne.s32.totalorder %s106, %s107
      %p118 = scmp.eq.s32.totalorder %s19, 0
      %p119 = por %p117, %p118
      %p120 = scmp.ne.s32.totalorder %s106, %s107
      %p121 = scmp.eq.s32.totalorder %s20, 1
      %p122 = por %p120, %p121
      %p124 = scmp.ne.s32.totalorder %s107, %s123
      %p125 = scmp.eq.s32.totalorder %s20, 0
      %p126 = por %p124, %p125
      %p127 = scmp.le.s32.totalorder 1, %s14
      %p128 = scmp.lt.s32.totalorder %s14, 3
      %p129 = pnand %p127, %p128
      %p130 = pneg %p129
      // Predicated region
      $region9: #{tpu_custom_call.1} parent=5 // pred_check
        _
      $region10: #{tpu_custom_call.1} parent=5 // pred_check_branch
        %132 = sbr.rel (%p129) target = $region12
      $region11: #{tpu_custom_call.1} parent=5 // pred_region
        %s133 = ssub.s32 %s14, 1
      $region12: #{tpu_custom_call.1} parent=5 // pred_fallthru
        _
      %p134 = scmp.lt.s32.totalorder %s14, 2
      // Predicated region
      $region13: #{tpu_custom_call.1} parent=5 // pred_check
        %p135 = pneg %p134
      $region14: #{tpu_custom_call.1} parent=5 // pred_check_branch
        %137 = sbr.rel (%p135) target = $region16
      $region15: #{tpu_custom_call.1} parent=5 // pred_region
        // Predicated region
        $region17: #{tpu_custom_call.1} parent=15 // pred_check
          %p138 = pneg %p57
        $region18: #{tpu_custom_call.1} parent=15 // pred_check_branch
          %140 = sbr.rel (%p138) target = $region20
        $region19: #{tpu_custom_call.1} parent=15 // pred_region
          %s141 = sand.u32 %s47, 1
          %s142 = scalar_lea.sflag [#allocation4], %s141
          %s143 = sand.u32 %s47, 1
          %s144 = smul.addr %s143, 4
          %s145 = scalar_lea.vmem [#allocation3], %s144
          %s147 = ssub.s32 64, 64
          %148 = vsyncadd %s142, %s147
          %s149 = sadd.s32 %s23, %s22
          %s150 = sadd.s32 %s149, %s21
          %s151 = smul.addr %s150, 64
          %s152 = scalar_lea.hbm %s0, %s151
          %s154 = sshll.u32 %s145, 4
          %s155 = int_to_ptr.vmem [resolvable:$true] %s154
          %157 = dma.hbm_to_vmem [thread:$0]  %s152, 64, %s155, %s142
        $region20: #{tpu_custom_call.1} parent=15 // pred_fallthru
          _
        // Predicated region
        $region21: #{tpu_custom_call.1} parent=15 // pred_check
          %p158 = pneg %p85
        $region22: #{tpu_custom_call.1} parent=15 // pred_check_branch
          %160 = sbr.rel (%p158) target = $region24
        $region23: #{tpu_custom_call.1} parent=15 // pred_region
          %p161 = scmp.lt.s32.totalorder %s21, 1
          %s162 = scalar_select %p161, %s21, 1
          %p163 = scmp.lt.s32.totalorder %s23, 0
          %s164 = scalar_select %p163, %s23, 0
          %s165 = sadd.s32 %s164, %s162
          %s166 = scalar_lea.vmem %s1, %s165
        $region24: #{tpu_custom_call.1} parent=15 // pred_fallthru
          _
      $region16: #{tpu_custom_call.1} parent=5 // pred_fallthru
        _
      %p167 = scmp.le.s32.totalorder 1, %s14
      %p168 = scmp.lt.s32.totalorder %s14, 3
      %p169 = pnand %p167, %p168
      %p170 = pneg %p169
      // Predicated region
      $region25: #{tpu_custom_call.1} parent=5 // pred_check
        _
      $region26: #{tpu_custom_call.1} parent=5 // pred_check_branch
        %172 = sbr.rel (%p169) target = $region28
      $region27: #{tpu_custom_call.1} parent=5 // pred_region
        %s173 = ssub.s32 %s14, 1
        %s174 = sand.u32 %s50, 1
        %s175 = scalar_lea.sflag [#allocation4], %s174
        %s176 = sand.u32 %s50, 1
        %s177 = smul.addr %s176, 4
        %s178 = scalar_lea.vmem [#allocation3], %s177
        // Predicated region
        $region29: #{tpu_custom_call.1} parent=27 // pred_check
          %p179 = pneg %p63
        $region30: #{tpu_custom_call.1} parent=27 // pred_check_branch
          %181 = sbr.rel (%p179) target = $region32
        $region31: #{tpu_custom_call.1} parent=27 // pred_region
          %182 = dma.done %s175, 64
        $region32: #{tpu_custom_call.1} parent=27 // pred_fallthru
          _
        %s183 = sand.u32 %s50, 1
        %s184 = scalar_lea.sflag [#allocation4], %s183
        %s185 = sand.u32 %s50, 1
        %s186 = smul.addr %s185, 4
        %s187 = scalar_lea.vmem [#allocation3], %s186
        %p188 = pneg %p63
        %p189 = pneg %p60
        %p190 = scmp.lt.s32.totalorder %s24, 1
        %s191 = scalar_select %p190, %s24, 1
        %p192 = scmp.lt.s32.totalorder %s26, 0
        %s193 = scalar_select %p192, %s26, 0
        %s194 = sadd.s32 %s193, %s191
        %s195 = scalar_lea.vmem %s1, %s194
        %p196 = pneg %p91
        %p197 = pneg %p88
        %p198 = pneg %p119
        %p199 = pneg %p116
        %s200 = sand.u32 %s106, 1
        %s201 = scalar_lea.sflag [#allocation5], %s200
        %s202 = sand.u32 %s106, 1
        %s203 = scalar_lea.vmem [#allocation6], %s202
        %p204 = scmp.lt.s32.totalorder %s24, 1
        %s205 = scalar_select %p204, %s24, 1
        %p206 = scmp.lt.s32.totalorder %s26, 0
        %s207 = scalar_select %p206, %s26, 0
        %s208 = sadd.s32 %s207, %s205
        %s209 = scalar_lea.vmem %s1, %s208
        %p212 = scmp.eq.s32.totalorder %s26, 0
        // Predicated region
        $region33: #{tpu_custom_call.1} parent=27 // pred_check
          %p213 = pneg %p212
        $region34: #{tpu_custom_call.1} parent=27 // pred_check_branch
          %215 = sbr.rel (%p213) target = $region36
        $region35: #{tpu_custom_call.1} parent=27 // pred_region
          %vm216 = vcmask 125952
          %217 = vst.msk [vmem:[#allocation2] sm:$0xf] %vm216, -inf
        $region36: #{tpu_custom_call.1} parent=27 // pred_fallthru
          _
        %v218 = vld [vmem:[%s178] sm:$0xf]
        %v219 = vld [vmem:[%s209] sm:$0x1]
        %vm220 = vnez %v219
        %v221 = vsel %vm220, 16843009, 0
        %v222 = vunpack.c.0.s8 %v221
        %vm223 = vcmp.ne.s32.totalorder %v222, 0
        %v224 = vsel %vm223, 1, 0
        %v225 = vlaneseq
        %v226 = vshrl.u32 %v225, 7
        %v227 = vsub.s32 0, %v226
        %v228 = vrot.slane %v224, %v227
        %vm229 = vcmp.eq.s32.totalorder %v228, 1
        %v230 = vsel %vm229, %v218, -inf
        %v231 = vld [vmem:[#allocation2] sm:$0xf]
        %v232 = vmax.f32 %v231, %v230
        %vm233 = vcmask 125952
        %234 = vst.msk [vmem:[#allocation2] sm:$0xf] %vm233, %v232
        // Predicated region
        $region37: #{tpu_custom_call.1} parent=27 // pred_check
          %p235 = pneg %p212
        $region38: #{tpu_custom_call.1} parent=27 // pred_check_branch
          %237 = sbr.rel (%p235) target = $region40
        $region39: #{tpu_custom_call.1} parent=27 // pred_region
          %v238 = vld [vmem:[#allocation2] sm:$0xf]
          %v239 = vsel %vm233, %v238, -inf
          %240 = vmax.xlane.f32.xlu0 %v239
          %v241 = vpop.xlane.xlu0 %240
          %v243 = vlaneseq
          %v244 = vand.u32 %v243, 127
          %v245 = vlaneseq
          %v246 = vshrl.u32 %v245, 7
          %v247 = vsub.s32 %v244, %v246
          %v248 = vrot.slane %v241, %v247
          %vm250 = vcmask 24576
          %251 = vst.msk [vmem:[%s203] sm:$0x1] %vm250, %v248
        $region40: #{tpu_custom_call.1} parent=27 // pred_fallthru
          _
        %s252 = sand.u32 %s106, 1
        %s253 = scalar_lea.sflag [#allocation5], %s252
        %s254 = sand.u32 %s106, 1
        %s255 = scalar_lea.vmem [#allocation6], %s254
        // Predicated region
        $region41: #{tpu_custom_call.1} parent=27 // pred_check
          %p256 = pneg %p116
        $region42: #{tpu_custom_call.1} parent=27 // pred_check_branch
          %258 = sbr.rel (%p256) target = $region44
        $region43: #{tpu_custom_call.1} parent=27 // pred_region
          %s260 = ssub.s32 16, 16
          %261 = vsyncadd %s253, %s260
          %s262 = sadd.s32 %s25, %s24
          %s263 = smul.addr %s262, 16
          %s264 = scalar_lea.hbm %s2, %s263
          %s266 = sshll.u32 %s255, 4
          %s267 = int_to_ptr.vmem [resolvable:$true] %s266
          %269 = dma.vmem_to_hbm [thread:$0]  %s267, 16, %s264, %s253
        $region44: #{tpu_custom_call.1} parent=27 // pred_fallthru
          _
      $region28: #{tpu_custom_call.1} parent=5 // pred_fallthru
        _
      %p270 = scmp.le.s32.totalorder 2, %s14
      // Predicated region
      $region45: #{tpu_custom_call.1} parent=5 // pred_check
        %p271 = pneg %p270
      $region46: #{tpu_custom_call.1} parent=5 // pred_check_branch
        %273 = sbr.rel (%p271) target = $region48
      $region47: #{tpu_custom_call.1} parent=5 // pred_region
        %s274 = ssub.s32 %s14, 2
        // Predicated region
        $region49: #{tpu_custom_call.1} parent=47 // pred_check
          %p275 = pneg %p122
        $region50: #{tpu_custom_call.1} parent=47 // pred_check_branch
          %277 = sbr.rel (%p275) target = $region52
        $region51: #{tpu_custom_call.1} parent=47 // pred_region
          %s278 = sand.u32 %s107, 1
          %s279 = scalar_lea.sflag [#allocation5], %s278
          %s280 = sand.u32 %s107, 1
          %s281 = scalar_lea.vmem [#allocation6], %s280
          %282 = dma.done %s279, 16
        $region52: #{tpu_custom_call.1} parent=47 // pred_fallthru
          _
      $region48: #{tpu_custom_call.1} parent=5 // pred_fallthru
        _
    $region6: #{tpu_custom_call.1} parent=1 // loop_footer
      %s18 = sadd.s32 1, %s14
    $region7: #{tpu_custom_call.1} parent=1 // loop_footer_branch
      %13 = sbr.rel target = $region3
    $region8: #{tpu_custom_call.1} parent=1 // loop_exit
      _
    %283 = vsyncpa [#allocation4], 1
    %s284 = scalar_lea.sflag [#allocation4], 1
    %285 = vsyncpa %s284, 1
    %286 = vsyncpa [#allocation5], 1
    %s287 = scalar_lea.sflag [#allocation5], 1
    %288 = vsyncpa %s287, 1

</llo_original>
